<compile_context>
chip_gen: v7x
topology: tpu7x:2x2x1
jax: 0.10.0
libtpu: 0.0.40
codegen_flags: <defaults>
</compile_context>

<pallas_src>
import functools

import jax
import jax.numpy as jnp
from jax import lax
from jax.experimental import pallas as pl
from jax.experimental.pallas import tpu as pltpu


def _shift_rows(v, k):
    """Return array whose row l holds v[l + k]; vacated rows are zero.

    k < 0  -> row l holds v[l - |k|] (top rows zero)   ... "left halo"
    k > 0  -> row l holds v[l + k]   (bottom rows zero) ... "right halo"
    Implemented as zero-concat + static slice (no wraparound, no masks).
    """
    L_, C_ = v.shape
    if k == 0:
        return v
    pad = jnp.zeros((abs(k), C_), v.dtype)
    if k > 0:
        return jnp.concatenate([v[k:, :], pad], axis=0)
    return jnp.concatenate([pad, v[: L_ + k, :]], axis=0)


def _conv_pre_wav_kernel(x_ref, w1_ref, w2_ref, s1_ref, b1_ref, s2_ref, b2_ref,
                         o_ref, y2_ref, *, L, pool, out_len):
    """One batch element.

    x_ref  : (1, L, C_in)        bf16 input (no pre-padding; halos handled here)
    w1_ref : (3, C_in, C_out)    bf16 conv1 weights, tap-major
    w2_ref : (3, C_out, C_out)   bf16 conv2 weights, tap-major
    s*/b*  : (1, C_out)          f32 folded BN scale / shift
    o_ref  : (1, out_len, C_out) f32 pooled output
    y2_ref : (L, C_out)          f32 VMEM staging for the strided max-pool reads
    """
    # ---- conv1: kernel_size=3, stride=1, padding=1 -------------------------
    # Shifted copies of x (with implicit zero padding) fed to 3 MXU matmuls,
    # accumulated in f32.
    x_b = x_ref[0]                         # (L, C_in) bf16
    x_m1 = _shift_rows(x_b, -1)            # x[l-1], zero at l=0
    x_p1 = _shift_rows(x_b, +1)            # x[l+1], zero at l=L-1

    y1 = jnp.dot(x_m1, w1_ref[0], preferred_element_type=jnp.float32)
    y1 = y1 + jnp.dot(x_b, w1_ref[1], preferred_element_type=jnp.float32)
    y1 = y1 + jnp.dot(x_p1, w1_ref[2], preferred_element_type=jnp.float32)

    # BN1 (folded) + ReLU in f32.
    y1 = jnp.maximum(y1 * s1_ref[...] + b1_ref[...], 0.0)          # (L, C_out) f32

    # ---- conv2: kernel_size=3, stride=1, dilation=2, padding=2 -------------
    y1_b = y1.astype(jnp.bfloat16)
    y1_m2 = _shift_rows(y1_b, -2)          # y1[l-2]
    y1_p2 = _shift_rows(y1_b, +2)          # y1[l+2]

    y2 = jnp.dot(y1_m2, w2_ref[0], preferred_element_type=jnp.float32)
    y2 = y2 + jnp.dot(y1_b, w2_ref[1], preferred_element_type=jnp.float32)
    y2 = y2 + jnp.dot(y1_p2, w2_ref[2], preferred_element_type=jnp.float32)

    # BN2 (folded) + ReLU in f32.
    y2 = jnp.maximum(y2 * s2_ref[...] + b2_ref[...], 0.0)          # (L, C_out) f32

    # ---- max_pool1d(kernel_size=pool, stride=pool) over the length axis -----
    # One dense scratch store, `pool` strided sublane loads, one dense output
    # store.  (Any L % pool tail is simply never read — matches PyTorch's floor.)
    y2_ref[...] = y2
    pooled = y2_ref[pl.ds(0, out_len, stride=pool), :]
    for p in range(1, pool):
        pooled = jnp.maximum(pooled, y2_ref[pl.ds(p, out_len, stride=pool), :])
    o_ref[0] = pooled.astype(o_ref.dtype)


def conv_pre_wav_block(x_ncl, w1, w2, bn1, bn2, pool_size, eps=1e-5):
    """x_ncl: (B, C_in, L) f32.  w1: (C_out, C_in, 3), w2: (C_out, C_out, 3).
    bn1/bn2: dicts with gamma/beta/mean/var of shape (C_out,)."""
    B, C_in, L = x_ncl.shape
    C_out = w1.shape[0]
    out_len = L // pool_size  # PyTorch max_pool1d floors; tail rows are dropped.

    # glue: NCL -> NLC (length-major per batch element), bf16 for the MXU / HBM.
    x_nlc = jnp.transpose(x_ncl, (0, 2, 1)).astype(jnp.bfloat16)     # (B, L, C_in)

    # glue: weights to tap-major (k, in, out) layout, bf16.
    w1_k = jnp.transpose(w1, (2, 1, 0)).astype(jnp.bfloat16)         # (3, C_in, C_out)
    w2_k = jnp.transpose(w2, (2, 1, 0)).astype(jnp.bfloat16)         # (3, C_out, C_out)

    def fold_bn(bn):
        scale = bn["gamma"] / jnp.sqrt(bn["var"] + eps)
        shift = bn["beta"] - bn["mean"] * scale
        return (scale.reshape(1, C_out).astype(jnp.float32),
                shift.reshape(1, C_out).astype(jnp.float32))

    s1, b1 = fold_bn(bn1)
    s2, b2 = fold_bn(bn2)

    kernel = functools.partial(_conv_pre_wav_kernel, L=L, pool=pool_size,
                               out_len=out_len)

    flops = 2 * B * L * 3 * (C_in * C_out + C_out * C_out)
    bytes_accessed = (B * L * C_in * 2            # bf16 input
                      + 3 * C_in * C_out * 2      # bf16 conv1 weights
                      + 3 * C_out * C_out * 2     # bf16 conv2 weights
                      + 4 * C_out * 4             # BN scale/shift
                      + B * out_len * C_out * 4)  # f32 output

    out_nlc = pl.pallas_call(
        kernel,
        out_shape=jax.ShapeDtypeStruct((B, out_len, C_out), jnp.float32),
        grid_spec=pltpu.PrefetchScalarGridSpec(
            num_scalar_prefetch=0,
            grid=(B,),
            in_specs=[
                pl.BlockSpec((1, L, C_in), lambda b: (b, 0, 0)),
                pl.BlockSpec((3, C_in, C_out), lambda b: (0, 0, 0)),
                pl.BlockSpec((3, C_out, C_out), lambda b: (0, 0, 0)),
                pl.BlockSpec((1, C_out), lambda b: (0, 0)),
                pl.BlockSpec((1, C_out), lambda b: (0, 0)),
                pl.BlockSpec((1, C_out), lambda b: (0, 0)),
                pl.BlockSpec((1, C_out), lambda b: (0, 0)),
            ],
            out_specs=pl.BlockSpec((1, out_len, C_out), lambda b: (b, 0, 0)),
            scratch_shapes=[pltpu.VMEM((L, C_out), jnp.float32)],
        ),
        compiler_params=pltpu.CompilerParams(
            dimension_semantics=("parallel",),
            vmem_limit_bytes=64 * 1024 * 1024),
        cost_estimate=pl.CostEstimate(flops=flops, transcendentals=0,
                                      bytes_accessed=bytes_accessed),
    )(x_nlc, w1_k, w2_k, s1, b1, s2, b2)

    # glue: NLC -> NCL to match the PyTorch output convention.
    return jnp.transpose(out_nlc, (0, 2, 1))


def _xavier_uniform(key, shape):
    # nn.init.xavier_uniform_ for Conv1d weight (out, in, k): fan_in=in*k, fan_out=out*k
    out_c, in_c, k = shape
    fan_in, fan_out = in_c * k, out_c * k
    bound = (6.0 / (fan_in + fan_out)) ** 0.5
    return jax.random.uniform(key, shape, jnp.float32, -bound, bound)


def _round_bf16(a):
    return a.astype(jnp.bfloat16).astype(jnp.float32)


def _reference(x_ncl, w1, w2, pool_size, eps=1e-5):
    """Pure-JAX reference (eval-mode BN with init stats) with the same bf16
    input/weight/activation rounding the kernel applies; accumulation in f32."""
    dn = lax.conv_dimension_numbers(x_ncl.shape, w1.shape, ("NCH", "OIH", "NCH"))
    y = lax.conv_general_dilated(_round_bf16(x_ncl), _round_bf16(w1),
                                 window_strides=(1,), padding=[(1, 1)],
                                 dimension_numbers=dn)
    y = jax.nn.relu(y / jnp.sqrt(1.0 + eps))
    y = lax.conv_general_dilated(_round_bf16(y), _round_bf16(w2),
                                 window_strides=(1,), padding=[(2, 2)],
                                 rhs_dilation=(2,), dimension_numbers=dn)
    y = jax.nn.relu(y / jnp.sqrt(1.0 + eps))
    B, C, L = y.shape
    ol = L // pool_size
    return y[:, :, :ol * pool_size].reshape(B, C, ol, pool_size).max(axis=-1)


if __name__ == "__main__":
    B, C_in, C_out, L, pool_size = 2, 4, 8, 16, 2

    key = jax.random.PRNGKey(0)
    k_x, k_w1, k_w2 = jax.random.split(key, 3)

    x = jax.random.normal(k_x, (B, C_in, L), jnp.float32)
    w1 = _xavier_uniform(k_w1, (C_out, C_in, 3))
    w2 = _xavier_uniform(k_w2, (C_out, C_out, 3))

    bn_init = lambda: {"gamma": jnp.ones((C_out,), jnp.float32),
                       "beta": jnp.zeros((C_out,), jnp.float32),
                       "mean": jnp.zeros((C_out,), jnp.float32),
                       "var": jnp.ones((C_out,), jnp.float32)}
    bn1, bn2 = bn_init(), bn_init()

    out = conv_pre_wav_block(x, w1, w2, bn1, bn2, pool_size)
    out = jax.block_until_ready(out)

    ref = _reference(x, w1, w2, pool_size)
    assert out.shape == (B, C_out, L // pool_size), out.shape
    max_err = float(jnp.max(jnp.abs(out - ref)))
    assert max_err < 1e-3, max_err

    print("KERNEL_OK")
</pallas_src>

<mosaic_0001>
module attributes {stable_mosaic.version = 11 : i64} {
  func.func @_conv_pre_wav_kernel(%arg0: i32, %arg1: memref<1x16x4xbf16, #tpu.memory_space<vmem>>, %arg2: memref<3x4x8xbf16, #tpu.memory_space<vmem>>, %arg3: memref<3x8x8xbf16, #tpu.memory_space<vmem>>, %arg4: memref<1x8xf32, #tpu.memory_space<vmem>>, %arg5: memref<1x8xf32, #tpu.memory_space<vmem>>, %arg6: memref<1x8xf32, #tpu.memory_space<vmem>>, %arg7: memref<1x8xf32, #tpu.memory_space<vmem>>, %arg8: memref<1x8x8xf32, #tpu.memory_space<vmem>>, %arg9: memref<16x8xf32, #tpu.memory_space<vmem>>) attributes {dimension_semantics = [#tpu.dimension_semantics<parallel>], iteration_bounds = array<i64: 2>, scalar_prefetch = 0 : i64, scratch_operands = 1 : i64, tpu.core_type = #tpu.core_type<tc>, window_params = [{transform_indices = @transform_0, window_bounds = array<i64: 1, 16, 4>}, {pipeline_mode = #tpu.pipeline_mode<synchronous>, transform_indices = @transform_1, window_bounds = array<i64: 3, 4, 8>}, {pipeline_mode = #tpu.pipeline_mode<synchronous>, transform_indices = @transform_2, window_bounds = array<i64: 3, 8, 8>}, {pipeline_mode = #tpu.pipeline_mode<synchronous>, transform_indices = @transform_3, window_bounds = array<i64: 1, 8>}, {pipeline_mode = #tpu.pipeline_mode<synchronous>, transform_indices = @transform_4, window_bounds = array<i64: 1, 8>}, {pipeline_mode = #tpu.pipeline_mode<synchronous>, transform_indices = @transform_5, window_bounds = array<i64: 1, 8>}, {pipeline_mode = #tpu.pipeline_mode<synchronous>, transform_indices = @transform_6, window_bounds = array<i64: 1, 8>}, {transform_indices = @transform_7, window_bounds = array<i64: 1, 8, 8>}]} {
    %c0 = arith.constant 0 : index
    %c0_0 = arith.constant 0 : index
    %c0_1 = arith.constant 0 : index
    %0 = vector.load %arg1[%c0, %c0_0, %c0_1] : memref<1x16x4xbf16, #tpu.memory_space<vmem>>, vector<1x16x4xbf16>
    %1 = vector.shape_cast %0 : vector<1x16x4xbf16> to vector<16x4xbf16>
    %cst = arith.constant 0.000000e+00 : bf16
    %2 = vector.broadcast %cst : bf16 to vector<1x4xbf16>
    %3 = vector.extract_strided_slice %1 {offsets = [0, 0], sizes = [15, 4], strides = [1, 1]} : vector<16x4xbf16> to vector<15x4xbf16>
    %4 = tpu.concatenate %2, %3 in 0 : vector<1x4xbf16>, vector<15x4xbf16> -> vector<16x4xbf16>
    %cst_2 = arith.constant 0.000000e+00 : bf16
    %5 = vector.broadcast %cst_2 : bf16 to vector<1x4xbf16>
    %6 = vector.extract_strided_slice %1 {offsets = [1, 0], sizes = [15, 4], strides = [1, 1]} : vector<16x4xbf16> to vector<15x4xbf16>
    %7 = tpu.concatenate %6, %5 in 0 : vector<15x4xbf16>, vector<1x4xbf16> -> vector<16x4xbf16>
    %c0_3 = arith.constant 0 : index
    %c0_4 = arith.constant 0 : index
    %c0_5 = arith.constant 0 : index
    %8 = vector.load %arg2[%c0_3, %c0_4, %c0_5] : memref<3x4x8xbf16, #tpu.memory_space<vmem>>, vector<1x4x8xbf16>
    %9 = vector.shape_cast %8 : vector<1x4x8xbf16> to vector<4x8xbf16>
    %cst_6 = arith.constant dense<0.000000e+00> : vector<16x8xf32>
    %10 = tpu.matmul %4, %9, %cst_6 {dimension_numbers = #tpu.dot_dimension_numbers<[1], [0], [0], [1], [0, 0, 1, 1], [], []>} : vector<16x4xbf16>, vector<4x8xbf16>, vector<16x8xf32> -> vector<16x8xf32>
    %c1 = arith.constant 1 : index
    %c0_7 = arith.constant 0 : index
    %c0_8 = arith.constant 0 : index
    %11 = vector.load %arg2[%c1, %c0_7, %c0_8] : memref<3x4x8xbf16, #tpu.memory_space<vmem>>, vector<1x4x8xbf16>
    %12 = vector.shape_cast %11 : vector<1x4x8xbf16> to vector<4x8xbf16>
    %cst_9 = arith.constant dense<0.000000e+00> : vector<16x8xf32>
    %13 = tpu.matmul %1, %12, %cst_9 {dimension_numbers = #tpu.dot_dimension_numbers<[1], [0], [0], [1], [0, 0, 1, 1], [], []>} : vector<16x4xbf16>, vector<4x8xbf16>, vector<16x8xf32> -> vector<16x8xf32>
    %14 = arith.addf %10, %13 : vector<16x8xf32>
    %c2 = arith.constant 2 : index
    %c0_10 = arith.constant 0 : index
    %c0_11 = arith.constant 0 : index
    %15 = vector.load %arg2[%c2, %c0_10, %c0_11] : memref<3x4x8xbf16, #tpu.memory_space<vmem>>, vector<1x4x8xbf16>
    %16 = vector.shape_cast %15 : vector<1x4x8xbf16> to vector<4x8xbf16>
    %cst_12 = arith.constant dense<0.000000e+00> : vector<16x8xf32>
    %17 = tpu.matmul %7, %16, %cst_12 {dimension_numbers = #tpu.dot_dimension_numbers<[1], [0], [0], [1], [0, 0, 1, 1], [], []>} : vector<16x4xbf16>, vector<4x8xbf16>, vector<16x8xf32> -> vector<16x8xf32>
    %18 = arith.addf %14, %17 : vector<16x8xf32>
    %c0_13 = arith.constant 0 : index
    %c0_14 = arith.constant 0 : index
    %19 = vector.load %arg4[%c0_13, %c0_14] : memref<1x8xf32, #tpu.memory_space<vmem>>, vector<1x8xf32>
    %20 = vector.broadcast %19 : vector<1x8xf32> to vector<16x8xf32>
    %21 = arith.mulf %18, %20 : vector<16x8xf32>
    %c0_15 = arith.constant 0 : index
    %c0_16 = arith.constant 0 : index
    %22 = vector.load %arg5[%c0_15, %c0_16] : memref<1x8xf32, #tpu.memory_space<vmem>>, vector<1x8xf32>
    %23 = vector.broadcast %22 : vector<1x8xf32> to vector<16x8xf32>
    %24 = arith.addf %21, %23 : vector<16x8xf32>
    %cst_17 = arith.constant 0.000000e+00 : f32
    %25 = vector.broadcast %cst_17 : f32 to vector<16x8xf32>
    %26 = arith.maximumf %24, %25 : vector<16x8xf32>
    %27 = arith.truncf %26 : vector<16x8xf32> to vector<16x8xbf16>
    %cst_18 = arith.constant 0.000000e+00 : bf16
    %28 = vector.broadcast %cst_18 : bf16 to vector<2x8xbf16>
    %29 = vector.extract_strided_slice %27 {offsets = [0, 0], sizes = [14, 8], strides = [1, 1]} : vector<16x8xbf16> to vector<14x8xbf16>
    %30 = tpu.concatenate %28, %29 in 0 : vector<2x8xbf16>, vector<14x8xbf16> -> vector<16x8xbf16>
    %cst_19 = arith.constant 0.000000e+00 : bf16
    %31 = vector.broadcast %cst_19 : bf16 to vector<2x8xbf16>
    %32 = vector.extract_strided_slice %27 {offsets = [2, 0], sizes = [14, 8], strides = [1, 1]} : vector<16x8xbf16> to vector<14x8xbf16>
    %33 = tpu.concatenate %32, %31 in 0 : vector<14x8xbf16>, vector<2x8xbf16> -> vector<16x8xbf16>
    %c0_20 = arith.constant 0 : index
    %c0_21 = arith.constant 0 : index
    %c0_22 = arith.constant 0 : index
    %34 = vector.load %arg3[%c0_20, %c0_21, %c0_22] : memref<3x8x8xbf16, #tpu.memory_space<vmem>>, vector<1x8x8xbf16>
    %35 = vector.shape_cast %34 : vector<1x8x8xbf16> to vector<8x8xbf16>
    %cst_23 = arith.constant dense<0.000000e+00> : vector<16x8xf32>
    %36 = tpu.matmul %30, %35, %cst_23 {dimension_numbers = #tpu.dot_dimension_numbers<[1], [0], [0], [1], [0, 0, 1, 1], [], []>} : vector<16x8xbf16>, vector<8x8xbf16>, vector<16x8xf32> -> vector<16x8xf32>
    %c1_24 = arith.constant 1 : index
    %c0_25 = arith.constant 0 : index
    %c0_26 = arith.constant 0 : index
    %37 = vector.load %arg3[%c1_24, %c0_25, %c0_26] : memref<3x8x8xbf16, #tpu.memory_space<vmem>>, vector<1x8x8xbf16>
    %38 = vector.shape_cast %37 : vector<1x8x8xbf16> to vector<8x8xbf16>
    %cst_27 = arith.constant dense<0.000000e+00> : vector<16x8xf32>
    %39 = tpu.matmul %27, %38, %cst_27 {dimension_numbers = #tpu.dot_dimension_numbers<[1], [0], [0], [1], [0, 0, 1, 1], [], []>} : vector<16x8xbf16>, vector<8x8xbf16>, vector<16x8xf32> -> vector<16x8xf32>
    %40 = arith.addf %36, %39 : vector<16x8xf32>
    %c2_28 = arith.constant 2 : index
    %c0_29 = arith.constant 0 : index
    %c0_30 = arith.constant 0 : index
    %41 = vector.load %arg3[%c2_28, %c0_29, %c0_30] : memref<3x8x8xbf16, #tpu.memory_space<vmem>>, vector<1x8x8xbf16>
    %42 = vector.shape_cast %41 : vector<1x8x8xbf16> to vector<8x8xbf16>
    %cst_31 = arith.constant dense<0.000000e+00> : vector<16x8xf32>
    %43 = tpu.matmul %33, %42, %cst_31 {dimension_numbers = #tpu.dot_dimension_numbers<[1], [0], [0], [1], [0, 0, 1, 1], [], []>} : vector<16x8xbf16>, vector<8x8xbf16>, vector<16x8xf32> -> vector<16x8xf32>
    %44 = arith.addf %40, %43 : vector<16x8xf32>
    %c0_32 = arith.constant 0 : index
    %c0_33 = arith.constant 0 : index
    %45 = vector.load %arg6[%c0_32, %c0_33] : memref<1x8xf32, #tpu.memory_space<vmem>>, vector<1x8xf32>
    %46 = vector.broadcast %45 : vector<1x8xf32> to vector<16x8xf32>
    %47 = arith.mulf %44, %46 : vector<16x8xf32>
    %c0_34 = arith.constant 0 : index
    %c0_35 = arith.constant 0 : index
    %48 = vector.load %arg7[%c0_34, %c0_35] : memref<1x8xf32, #tpu.memory_space<vmem>>, vector<1x8xf32>
    %49 = vector.broadcast %48 : vector<1x8xf32> to vector<16x8xf32>
    %50 = arith.addf %47, %49 : vector<16x8xf32>
    %cst_36 = arith.constant 0.000000e+00 : f32
    %51 = vector.broadcast %cst_36 : f32 to vector<16x8xf32>
    %52 = arith.maximumf %50, %51 : vector<16x8xf32>
    %c0_37 = arith.constant 0 : index
    %c0_38 = arith.constant 0 : index
    %53 = vector.load %arg9[%c0_37, %c0_38] : memref<16x8xf32, #tpu.memory_space<vmem>>, vector<16x8xf32>
    tpu.vector_store %arg9[%c0_37, %c0_38], %52 {strides = array<i32>} : memref<16x8xf32, #tpu.memory_space<vmem>>, vector<16x8xf32>,
    %c0_39 = arith.constant 0 : index
    %c0_40 = arith.constant 0 : index
    %54 = tpu.strided_load %arg9[%c0_39, %c0_40] {strides = array<i32: 2, 1>} : memref<16x8xf32, #tpu.memory_space<vmem>>, vector<8x8xf32>
    %c1_41 = arith.constant 1 : index
    %c0_42 = arith.constant 0 : index
    %55 = tpu.strided_load %arg9[%c1_41, %c0_42] {strides = array<i32: 2, 1>} : memref<16x8xf32, #tpu.memory_space<vmem>>, vector<8x8xf32>
    %56 = arith.maximumf %54, %55 : vector<8x8xf32>
    %c0_43 = arith.constant 0 : index
    %c0_44 = arith.constant 0 : index
    %c0_45 = arith.constant 0 : index
    %57 = vector.load %arg8[%c0_43, %c0_44, %c0_45] : memref<1x8x8xf32, #tpu.memory_space<vmem>>, vector<1x8x8xf32>
    %58 = vector.shape_cast %57 : vector<1x8x8xf32> to vector<8x8xf32>
    %59 = vector.shape_cast %56 : vector<8x8xf32> to vector<1x8x8xf32>
    tpu.vector_store %arg8[%c0_43, %c0_44, %c0_45], %59 {strides = array<i32>} : memref<1x8x8xf32, #tpu.memory_space<vmem>>, vector<1x8x8xf32>,
    return
  }
  func.func @transform_0(%arg0: i32) -> (i32, i32, i32) {
    %c0_i32 = arith.constant 0 : i32
    %c0_i32_0 = arith.constant 0 : i32
    %c0_i32_1 = arith.constant 0 : i32
    return %arg0, %c0_i32, %c0_i32_0 : i32, i32, i32
  }
  func.func @transform_1(%arg0: i32) -> (i32, i32, i32) {
    %c0_i32 = arith.constant 0 : i32
    %c0_i32_0 = arith.constant 0 : i32
    %c0_i32_1 = arith.constant 0 : i32
    %c0_i32_2 = arith.constant 0 : i32
    return %c0_i32, %c0_i32_0, %c0_i32_1 : i32, i32, i32
  }
  func.func @transform_2(%arg0: i32) -> (i32, i32, i32) {
    %c0_i32 = arith.constant 0 : i32
    %c0_i32_0 = arith.constant 0 : i32
    %c0_i32_1 = arith.constant 0 : i32
    %c0_i32_2 = arith.constant 0 : i32
    return %c0_i32, %c0_i32_0, %c0_i32_1 : i32, i32, i32
  }
  func.func @transform_3(%arg0: i32) -> (i32, i32) {
    %c0_i32 = arith.constant 0 : i32
    %c0_i32_0 = arith.constant 0 : i32
    %c0_i32_1 = arith.constant 0 : i32
    return %c0_i32, %c0_i32_0 : i32, i32
  }
  func.func @transform_4(%arg0: i32) -> (i32, i32) {
    %c0_i32 = arith.constant 0 : i32
    %c0_i32_0 = arith.constant 0 : i32
    %c0_i32_1 = arith.constant 0 : i32
    return %c0_i32, %c0_i32_0 : i32, i32
  }
  func.func @transform_5(%arg0: i32) -> (i32, i32) {
    %c0_i32 = arith.constant 0 : i32
    %c0_i32_0 = arith.constant 0 : i32
    %c0_i32_1 = arith.constant 0 : i32
    return %c0_i32, %c0_i32_0 : i32, i32
  }
  func.func @transform_6(%arg0: i32) -> (i32, i32) {
    %c0_i32 = arith.constant 0 : i32
    %c0_i32_0 = arith.constant 0 : i32
    %c0_i32_1 = arith.constant 0 : i32
    return %c0_i32, %c0_i32_0 : i32, i32
  }
  func.func @transform_7(%arg0: i32) -> (i32, i32, i32) {
    %c0_i32 = arith.constant 0 : i32
    %c0_i32_0 = arith.constant 0 : i32
    %c0_i32_1 = arith.constant 0 : i32
    return %arg0, %c0_i32, %c0_i32_0 : i32, i32, i32
  }
}

</mosaic_0001>

<llo_original>
// kernel: tpu_custom_call.1
$region0: #{tpu_custom_call.1}
  #allocation0 [shape = 'u32[]', space=smem, size = 0x4, offset = 0x4, fixed_abs, tag = 'smem constant byte address 0x4 - core index']
  #allocation1 [shape = 'u32[144,128]{1,0:T(1,128)}', space=vmem, size = 0x12000, scoped, tag = 'internal scratch']
  #allocation2 [shape = 'f32[16,8]{1,0:T(8,128)}', space=vmem, size = 0x2000, scoped, tag = 'scratch operand']
  %s0 = inlined_call_operand.hbm [shape: bf16[2,16,4], index: 0, kind: input, shape index: {}]
  %s1 = inlined_call_operand.hbm [shape: bf16[3,4,8], index: 1, kind: input, shape index: {}]
  %s2 = inlined_call_operand.hbm [shape: bf16[3,8,8], index: 2, kind: input, shape index: {}]
  %s3 = inlined_call_operand.hbm [shape: f32[1,8], index: 3, kind: input, shape index: {}]
  %s4 = inlined_call_operand.hbm [shape: f32[1,8], index: 4, kind: input, shape index: {}]
  %s5 = inlined_call_operand.hbm [shape: f32[1,8], index: 5, kind: input, shape index: {}]
  %s6 = inlined_call_operand.hbm [shape: f32[1,8], index: 6, kind: input, shape index: {}]
  %s7 = inlined_call_operand.hbm [shape: f32[2,8,8], index: 7, kind: output, shape index: {}]
  %s8 = sld [smem:[#allocation0]]
  $region89: #{tpu_custom_call.1} parent=0
    _
  %s10 = ssub.s32 1, %s8
  %s11 = scalar_select 0, %s10, %s8
  $region1: #{tpu_custom_call.1} parent=0
    #allocation3 [shape = 'u8[8192]{0}', space=vmem, size = 0x2000, scoped, tag = 'input window, operand 0']
    #allocation4 [shape = 's32[2]{0}', space=sflag, size = 0x8, scoped, tag = 'scoped memory for tpu_custom_call.1']
    #allocation5 [shape = 's32[2]{0}', space=sflag, size = 0x8, scoped, tag = 'scoped memory for tpu_custom_call.1']
    #allocation6 [shape = 'u8[3072]{0}', space=vmem, size = 0xc00, scoped, tag = 'input window, operand 1, single buffered']
    #allocation7 [shape = 's32[1]{0}', space=sflag, size = 0x4, scoped, tag = 'scoped memory for tpu_custom_call.1']
    #allocation8 [shape = 'u8[6144]{0}', space=vmem, size = 0x1800, scoped, tag = 'input window, operand 2, single buffered']
    #allocation9 [shape = 'u8[512]{0}', space=vmem, size = 0x400, scoped, tag = 'input window, operand 3, single buffered']
    #allocation10 [shape = 's32[1]{0}', space=sflag, size = 0x4, scoped, tag = 'scoped memory for tpu_custom_call.1']
    #allocation11 [shape = 'u8[512]{0}', space=vmem, size = 0x400, scoped, tag = 'input window, operand 4, single buffered']
    #allocation12 [shape = 'u8[512]{0}', space=vmem, size = 0x400, scoped, tag = 'input window, operand 5, single buffered']
    #allocation13 [shape = 's32[1]{0}', space=sflag, size = 0x4, scoped, tag = 'scoped memory for tpu_custom_call.1']
    #allocation14 [shape = 'u8[512]{0}', space=vmem, size = 0x400, scoped, tag = 'input window, operand 6, single buffered']
    #allocation15 [shape = 'u8[8192]{0}', space=vmem, size = 0x2000, scoped, tag = 'output window, operand 0']
    %12 = vsyncpa [#allocation4], 0
    %s13 = scalar_lea.sflag [#allocation4], 1
    %14 = vsyncpa %s13, 0
    %15 = vsyncpa [#allocation7], 0
    %16 = vsyncpa [#allocation10], 0
    %17 = vsyncpa [#allocation13], 0
    %18 = vsyncpa [#allocation5], 0
    %s19 = scalar_lea.sflag [#allocation5], 1
    %20 = vsyncpa %s19, 0
    loop: start=0, step=1, limit=4
    $region2: #{tpu_custom_call.1} parent=1 // loop_pre_header
      _
    $region3: #{tpu_custom_call.1} parent=1 // loop_header
      %s22 = sphi 0, %s26
      %p23 = scmp.ge.s32.totalorder %s22, 4
      %s32 = sphi 0, %s34
      %s35 = sphi 0, %s32
      %s36 = sphi 0, %s35
      %s52 = sphi 0, %s36
      %s56 = sphi 0, %s56
      %s58 = sphi 0, %s56
      %s59 = sphi 0, %s58
      %s73 = sphi 0, %s59
      %s77 = sphi 0, %s77
      %s79 = sphi 0, %s77
      %s80 = sphi 0, %s79
      %s94 = sphi 0, %s80
      %s98 = sphi 0, %s98
      %s100 = sphi 0, %s98
      %s101 = sphi 0, %s100
      %s115 = sphi 0, %s101
      %s119 = sphi 0, %s119
      %s121 = sphi 0, %s119
      %s122 = sphi 0, %s121
      %s136 = sphi 0, %s122
      %s140 = sphi 0, %s140
      %s142 = sphi 0, %s140
      %s143 = sphi 0, %s142
      %s157 = sphi 0, %s143
      %s161 = sphi 0, %s161
      %s163 = sphi 0, %s161
      %s164 = sphi 0, %s163
      %s178 = sphi 0, %s164
      %s184 = sphi 0, %s186
      %s187 = sphi 0, %s184
      %s188 = sphi 0, %s187
      %s204 = sphi 0, %s188
    $region4: #{tpu_custom_call.1} parent=1 // loop_header_branch
      %25 = sbr.rel (%p23) target = $region8
    $region5: #{tpu_custom_call.1} parent=1 // loop_body
      %s27 = ssub.s32 %s22, 1
      %s28 = ssub.s32 %s22, 2
      %s29 = sadd.s32 %s22, 1
      %s30 = ssub.s32 %s22, %s29
      %p31 = scmp.eq.s32.totalorder %s30, 0
      %s33 = sadd.s32 %s32, 1
      %s34 = scalar_select %p31, %s32, %s33
      %p37 = pneg %p31
      %p38 = scmp.eq.s32.totalorder %s22, 1
      %p39 = por %p37, %p38
      %p40 = scmp.ne.s32.totalorder %s32, %s35
      %p41 = scmp.eq.s32.totalorder %s22, 0
      %p42 = por %p40, %p41
      %p43 = scmp.ne.s32.totalorder %s32, %s35
      %p44 = scmp.eq.s32.totalorder %s27, 1
      %p45 = por %p43, %p44
      %p46 = scmp.ne.s32.totalorder %s35, %s36
      %p47 = scmp.eq.s32.totalorder %s27, 0
      %p48 = por %p46, %p47
      %p49 = scmp.ne.s32.totalorder %s35, %s36
      %p50 = scmp.eq.s32.totalorder %s28, 1
      %p51 = por %p49, %p50
      %p53 = scmp.ne.s32.totalorder %s36, %s52
      %p54 = scmp.eq.s32.totalorder %s28, 0
      %p55 = por %p53, %p54
      %s57 = sadd.s32 %s56, 1
      %p60 = scmp.eq.s32.totalorder %s22, 1
      %p61 = scmp.ne.s32.totalorder %s56, %s58
      %p62 = scmp.eq.s32.totalorder %s22, 0
      %p63 = por %p61, %p62
      %p64 = scmp.ne.s32.totalorder %s56, %s58
      %p65 = scmp.eq.s32.totalorder %s27, 1
      %p66 = por %p64, %p65
      %p67 = scmp.ne.s32.totalorder %s58, %s59
      %p68 = scmp.eq.s32.totalorder %s27, 0
      %p69 = por %p67, %p68
      %p70 = scmp.ne.s32.totalorder %s58, %s59
      %p71 = scmp.eq.s32.totalorder %s28, 1
      %p72 = por %p70, %p71
      %p74 = scmp.ne.s32.totalorder %s59, %s73
      %p75 = scmp.eq.s32.totalorder %s28, 0
      %p76 = por %p74, %p75
      %s78 = sadd.s32 %s77, 1
      %p81 = scmp.eq.s32.totalorder %s22, 1
      %p82 = scmp.ne.s32.totalorder %s77, %s79
      %p83 = scmp.eq.s32.totalorder %s22, 0
      %p84 = por %p82, %p83
      %p85 = scmp.ne.s32.totalorder %s77, %s79
      %p86 = scmp.eq.s32.totalorder %s27, 1
      %p87 = por %p85, %p86
      %p88 = scmp.ne.s32.totalorder %s79, %s80
      %p89 = scmp.eq.s32.totalorder %s27, 0
      %p90 = por %p88, %p89
      %p91 = scmp.ne.s32.totalorder %s79, %s80
      %p92 = scmp.eq.s32.totalorder %s28, 1
      %p93 = por %p91, %p92
      %p95 = scmp.ne.s32.totalorder %s80, %s94
      %p96 = scmp.eq.s32.totalorder %s28, 0
      %p97 = por %p95, %p96
      %s99 = sadd.s32 %s98, 1
      %p102 = scmp.eq.s32.totalorder %s22, 1
      %p103 = scmp.ne.s32.totalorder %s98, %s100
      %p104 = scmp.eq.s32.totalorder %s22, 0
      %p105 = por %p103, %p104
      %p106 = scmp.ne.s32.totalorder %s98, %s100
      %p107 = scmp.eq.s32.totalorder %s27, 1
      %p108 = por %p106, %p107
      %p109 = scmp.ne.s32.totalorder %s100, %s101
      %p110 = scmp.eq.s32.totalorder %s27, 0
      %p111 = por %p109, %p110
      %p112 = scmp.ne.s32.totalorder %s100, %s101
      %p113 = scmp.eq.s32.totalorder %s28, 1
      %p114 = por %p112, %p113
      %p116 = scmp.ne.s32.totalorder %s101, %s115
      %p117 = scmp.eq.s32.totalorder %s28, 0
      %p118 = por %p116, %p117
      %s120 = sadd.s32 %s119, 1
      %p123 = scmp.eq.s32.totalorder %s22, 1
      %p124 = scmp.ne.s32.totalorder %s119, %s121
      %p125 = scmp.eq.s32.totalorder %s22, 0
      %p126 = por %p124, %p125
      %p127 = scmp.ne.s32.totalorder %s119, %s121
      %p128 = scmp.eq.s32.totalorder %s27, 1
      %p129 = por %p127, %p128
      %p130 = scmp.ne.s32.totalorder %s121, %s122
      %p131 = scmp.eq.s32.totalorder %s27, 0
      %p132 = por %p130, %p131
      %p133 = scmp.ne.s32.totalorder %s121, %s122
      %p134 = scmp.eq.s32.totalorder %s28, 1
      %p135 = por %p133, %p134
      %p137 = scmp.ne.s32.totalorder %s122, %s136
      %p138 = scmp.eq.s32.totalorder %s28, 0
      %p139 = por %p137, %p138
      %s141 = sadd.s32 %s140, 1
      %p144 = scmp.eq.s32.totalorder %s22, 1
      %p145 = scmp.ne.s32.totalorder %s140, %s142
      %p146 = scmp.eq.s32.totalorder %s22, 0
      %p147 = por %p145, %p146
      %p148 = scmp.ne.s32.totalorder %s140, %s142
      %p149 = scmp.eq.s32.totalorder %s27, 1
      %p150 = por %p148, %p149
      %p151 = scmp.ne.s32.totalorder %s142, %s143
      %p152 = scmp.eq.s32.totalorder %s27, 0
      %p153 = por %p151, %p152
      %p154 = scmp.ne.s32.totalorder %s142, %s143
      %p155 = scmp.eq.s32.totalorder %s28, 1
      %p156 = por %p154, %p155
      %p158 = scmp.ne.s32.totalorder %s143, %s157
      %p159 = scmp.eq.s32.totalorder %s28, 0
      %p160 = por %p158, %p159
      %s162 = sadd.s32 %s161, 1
      %p165 = scmp.eq.s32.totalorder %s22, 1
      %p166 = scmp.ne.s32.totalorder %s161, %s163
      %p167 = scmp.eq.s32.totalorder %s22, 0
      %p168 = por %p166, %p167
      %p169 = scmp.ne.s32.totalorder %s161, %s163
      %p170 = scmp.eq.s32.totalorder %s27, 1
      %p171 = por %p169, %p170
      %p172 = scmp.ne.s32.totalorder %s163, %s164
      %p173 = scmp.eq.s32.totalorder %s27, 0
      %p174 = por %p172, %p173
      %p175 = scmp.ne.s32.totalorder %s163, %s164
      %p176 = scmp.eq.s32.totalorder %s28, 1
      %p177 = por %p175, %p176
      %p179 = scmp.ne.s32.totalorder %s164, %s178
      %p180 = scmp.eq.s32.totalorder %s28, 0
      %p181 = por %p179, %p180
      %s182 = ssub.s32 %s22, %s29
      %p183 = scmp.eq.s32.totalorder %s182, 0
      %s185 = sadd.s32 %s184, 1
      %s186 = scalar_select %p183, %s184, %s185
      %p189 = pneg %p183
      %p190 = scmp.eq.s32.totalorder %s22, 1
      %p191 = por %p189, %p190
      %p192 = scmp.ne.s32.totalorder %s184, %s187
      %p193 = scmp.eq.s32.totalorder %s22, 0
      %p194 = por %p192, %p193
      %p195 = scmp.ne.s32.totalorder %s184, %s187
      %p196 = scmp.eq.s32.totalorder %s27, 1
      %p197 = por %p195, %p196
      %p198 = scmp.ne.s32.totalorder %s187, %s188
      %p199 = scmp.eq.s32.totalorder %s27, 0
      %p200 = por %p198, %p199
      %p201 = scmp.ne.s32.totalorder %s187, %s188
      %p202 = scmp.eq.s32.totalorder %s28, 1
      %p203 = por %p201, %p202
      %p205 = scmp.ne.s32.totalorder %s188, %s204
      %p206 = scmp.eq.s32.totalorder %s28, 0
      %p207 = por %p205, %p206
      %p208 = scmp.le.s32.totalorder 1, %s22
      %p209 = scmp.lt.s32.totalorder %s22, 3
      %p210 = pnand %p208, %p209
      %p211 = pneg %p210
      // Predicated region
      $region9: #{tpu_custom_call.1} parent=5 // pred_check
        _
      $region10: #{tpu_custom_call.1} parent=5 // pred_check_branch
        %213 = sbr.rel (%p210) target = $region12
      $region11: #{tpu_custom_call.1} parent=5 // pred_region
        %s214 = ssub.s32 %s22, 1
        // Predicated region
        $region13: #{tpu_custom_call.1} parent=11 // pred_check
          %p215 = pneg %p69
        $region14: #{tpu_custom_call.1} parent=11 // pred_check_branch
          %217 = sbr.rel (%p215) target = $region16
        $region15: #{tpu_custom_call.1} parent=11 // pred_region
          %s219 = ssub.s32 96, 96
          %220 = vsyncadd [#allocation7], %s219
          %s221 = sshll.u32 [#allocation6], 4
          %s222 = int_to_ptr.vmem [resolvable:$true] %s221
          %227 = dma.hbm_to_vmem [thread:$0]  %s1, 96, %s222, [#allocation7], 32, 32, 2
        $region16: #{tpu_custom_call.1} parent=11 // pred_fallthru
          _
        // Predicated region
        $region17: #{tpu_custom_call.1} parent=11 // pred_check
          %p228 = pneg %p90
        $region18: #{tpu_custom_call.1} parent=11 // pred_check_branch
          %230 = sbr.rel (%p228) target = $region20
        $region19: #{tpu_custom_call.1} parent=11 // pred_region
          %s232 = ssub.s32 192, 192
          %233 = vsyncadd [#allocation7], %s232
          %s234 = sshll.u32 [#allocation8], 4
          %s235 = int_to_ptr.vmem [resolvable:$true] %s234
          %240 = dma.hbm_to_vmem [thread:$0]  %s2, 192, %s235, [#allocation7], 64, 64, 4
        $region20: #{tpu_custom_call.1} parent=11 // pred_fallthru
          _
        // Predicated region
        $region21: #{tpu_custom_call.1} parent=11 // pred_check
          %p241 = pneg %p111
        $region22: #{tpu_custom_call.1} parent=11 // pred_check_branch
          %243 = sbr.rel (%p241) target = $region24
        $region23: #{tpu_custom_call.1} parent=11 // pred_region
          %s245 = ssub.s32 16, 16
          %246 = vsyncadd [#allocation10], %s245
          %s248 = sshll.u32 [#allocation9], 4
          %s249 = int_to_ptr.vmem [resolvable:$true] %s248
          %251 = dma.hbm_to_vmem [thread:$0]  %s3, 16, %s249, [#allocation10]
        $region24: #{tpu_custom_call.1} parent=11 // pred_fallthru
          _
        // Predicated region
        $region25: #{tpu_custom_call.1} parent=11 // pred_check
          %p252 = pneg %p132
        $region26: #{tpu_custom_call.1} parent=11 // pred_check_branch
          %254 = sbr.rel (%p252) target = $region28
        $region27: #{tpu_custom_call.1} parent=11 // pred_region
          %s256 = ssub.s32 16, 16
          %257 = vsyncadd [#allocation10], %s256
          %s259 = sshll.u32 [#allocation11], 4
          %s260 = int_to_ptr.vmem [resolvable:$true] %s259
          %262 = dma.hbm_to_vmem [thread:$0]  %s4, 16, %s260, [#allocation10]
        $region28: #{tpu_custom_call.1} parent=11 // pred_fallthru
          _
        // Predicated region
        $region29: #{tpu_custom_call.1} parent=11 // pred_check
          %p263 = pneg %p153
        $region30: #{tpu_custom_call.1} parent=11 // pred_check_branch
          %265 = sbr.rel (%p263) target = $region32
        $region31: #{tpu_custom_call.1} parent=11 // pred_region
          %s267 = ssub.s32 16, 16
          %268 = vsyncadd [#allocation13], %s267
          %s270 = sshll.u32 [#allocation12], 4
          %s271 = int_to_ptr.vmem [resolvable:$true] %s270
          %273 = dma.hbm_to_vmem [thread:$0]  %s5, 16, %s271, [#allocation13]
        $region32: #{tpu_custom_call.1} parent=11 // pred_fallthru
          _
        // Predicated region
        $region33: #{tpu_custom_call.1} parent=11 // pred_check
          %p274 = pneg %p174
        $region34: #{tpu_custom_call.1} parent=11 // pred_check_branch
          %276 = sbr.rel (%p274) target = $region36
        $region35: #{tpu_custom_call.1} parent=11 // pred_region
          %s278 = ssub.s32 16, 16
          %279 = vsyncadd [#allocation13], %s278
          %s281 = sshll.u32 [#allocation14], 4
          %s282 = int_to_ptr.vmem [resolvable:$true] %s281
          %284 = dma.hbm_to_vmem [thread:$0]  %s6, 16, %s282, [#allocation13]
        $region36: #{tpu_custom_call.1} parent=11 // pred_fallthru
          _
      $region12: #{tpu_custom_call.1} parent=5 // pred_fallthru
        _
      %p285 = scmp.lt.s32.totalorder %s22, 2
      // Predicated region
      $region37: #{tpu_custom_call.1} parent=5 // pred_check
        %p286 = pneg %p285
      $region38: #{tpu_custom_call.1} parent=5 // pred_check_branch
        %288 = sbr.rel (%p286) target = $region40
      $region39: #{tpu_custom_call.1} parent=5 // pred_region
        // Predicated region
        $region41: #{tpu_custom_call.1} parent=39 // pred_check
          %p289 = pneg %p42
        $region42: #{tpu_custom_call.1} parent=39 // pred_check_branch
          %291 = sbr.rel (%p289) target = $region44
        $region43: #{tpu_custom_call.1} parent=39 // pred_region
          %s292 = sand.u32 %s32, 1
          %s293 = scalar_lea.sflag [#allocation4], %s292
          %s294 = sand.u32 %s32, 1
          %s295 = smul.addr %s294, 8
          %s296 = scalar_lea.vmem [#allocation3], %s295
          %s298 = ssub.s32 128, 128
          %299 = vsyncadd %s293, %s298
          %s300 = smul.addr %s22, 2
          %s301 = smul.addr %s300, 64
          %s302 = scalar_lea.hbm %s0, %s301
          %s303 = sshll.u32 %s296, 4
          %s304 = int_to_ptr.vmem [resolvable:$true] %s303
          %309 = dma.hbm_to_vmem [thread:$0]  %s302, 128, %s304, %s293, 64, 64, 4
        $region44: #{tpu_custom_call.1} parent=39 // pred_fallthru
          _
      $region40: #{tpu_custom_call.1} parent=5 // pred_fallthru
        _
      %p310 = scmp.le.s32.totalorder 1, %s22
      %p311 = scmp.lt.s32.totalorder %s22, 3
      %p312 = pnand %p310, %p311
      %p313 = pneg %p312
      // Predicated region
      $region45: #{tpu_custom_call.1} parent=5 // pred_check
        _
      $region46: #{tpu_custom_call.1} parent=5 // pred_check_branch
        %315 = sbr.rel (%p312) target = $region48
      $region47: #{tpu_custom_call.1} parent=5 // pred_region
        %s316 = ssub.s32 %s22, 1
        %s317 = sand.u32 %s35, 1
        %s318 = scalar_lea.sflag [#allocation4], %s317
        %s319 = sand.u32 %s35, 1
        %s320 = smul.addr %s319, 8
        %s321 = scalar_lea.vmem [#allocation3], %s320
        // Predicated region
        $region49: #{tpu_custom_call.1} parent=47 // pred_check
          %p322 = pneg %p48
        $region50: #{tpu_custom_call.1} parent=47 // pred_check_branch
          %324 = sbr.rel (%p322) target = $region52
        $region51: #{tpu_custom_call.1} parent=47 // pred_region
          %325 = dma.done %s318, 128
        $region52: #{tpu_custom_call.1} parent=47 // pred_fallthru
          _
        // Predicated region
        $region53: #{tpu_custom_call.1} parent=47 // pred_check
          %p326 = pneg %p69
        $region54: #{tpu_custom_call.1} parent=47 // pred_check_branch
          %328 = sbr.rel (%p326) target = $region56
        $region55: #{tpu_custom_call.1} parent=47 // pred_region
          %329 = dma.done [#allocation7], 96
        $region56: #{tpu_custom_call.1} parent=47 // pred_fallthru
          _
        // Predicated region
        $region57: #{tpu_custom_call.1} parent=47 // pred_check
          %p330 = pneg %p90
        $region58: #{tpu_custom_call.1} parent=47 // pred_check_branch
          %332 = sbr.rel (%p330) target = $region60
        $region59: #{tpu_custom_call.1} parent=47 // pred_region
          %333 = dma.done [#allocation7], 192
        $region60: #{tpu_custom_call.1} parent=47 // pred_fallthru
          _
        // Predicated region
        $region61: #{tpu_custom_call.1} parent=47 // pred_check
          %p334 = pneg %p111
        $region62: #{tpu_custom_call.1} parent=47 // pred_check_branch
          %336 = sbr.rel (%p334) target = $region64
        $region63: #{tpu_custom_call.1} parent=47 // pred_region
          %337 = dma.done [#allocation10], 16
        $region64: #{tpu_custom_call.1} parent=47 // pred_fallthru
          _
        // Predicated region
        $region65: #{tpu_custom_call.1} parent=47 // pred_check
          %p338 = pneg %p132
        $region66: #{tpu_custom_call.1} parent=47 // pred_check_branch
          %340 = sbr.rel (%p338) target = $region68
        $region67: #{tpu_custom_call.1} parent=47 // pred_region
          %341 = dma.done [#allocation10], 16
        $region68: #{tpu_custom_call.1} parent=47 // pred_fallthru
          _
        // Predicated region
        $region69: #{tpu_custom_call.1} parent=47 // pred_check
          %p342 = pneg %p153
        $region70: #{tpu_custom_call.1} parent=47 // pred_check_branch
          %344 = sbr.rel (%p342) target = $region72
        $region71: #{tpu_custom_call.1} parent=47 // pred_region
          %345 = dma.done [#allocation13], 16
        $region72: #{tpu_custom_call.1} parent=47 // pred_fallthru
          _
        // Predicated region
        $region73: #{tpu_custom_call.1} parent=47 // pred_check
          %p346 = pneg %p174
        $region74: #{tpu_custom_call.1} parent=47 // pred_check_branch
          %348 = sbr.rel (%p346) target = $region76
        $region75: #{tpu_custom_call.1} parent=47 // pred_region
          %349 = dma.done [#allocation13], 16
        $region76: #{tpu_custom_call.1} parent=47 // pred_fallthru
          _
        %s350 = sand.u32 %s35, 1
        %s351 = scalar_lea.sflag [#allocation4], %s350
        %s352 = sand.u32 %s35, 1
        %s353 = smul.addr %s352, 8
        %s354 = scalar_lea.vmem [#allocation3], %s353
        %p355 = pneg %p48
        %p356 = pneg %p45
        %p357 = pneg %p69
        %p358 = pneg %p66
        %p359 = pneg %p90
        %p360 = pneg %p87
        %p361 = pneg %p111
        %p362 = pneg %p108
        %p363 = pneg %p132
        %p364 = pneg %p129
        %p365 = pneg %p153
        %p366 = pneg %p150
        %p367 = pneg %p174
        %p368 = pneg %p171
        %p369 = pneg %p200
        %p370 = pneg %p197
        %s371 = sand.u32 %s187, 1
        %s372 = scalar_lea.sflag [#allocation5], %s371
        %s373 = sand.u32 %s187, 1
        %s374 = smul.addr %s373, 8
        %s375 = scalar_lea.vmem [#allocation15], %s374
        %v377 = vld [vmem:[%s321] sm:$0xf]
        %v378 = vld [vmem:[%s321 + $0x4] sm:$0xf]
        %v381 = vunpack.c.l.b16 %v377
        %v382 = vunpack.c.l.b16 %v378
        %v383 = vpack.c.b16 %v382, %v381
        %v385 = vshrl.u32 %v383, 16
        %v387 = vrot.slane %v385, 7
        %v388 = vshll.u32 %v383, 16
        %v390 = vor.u32 %v387, %v388
        %vm392 = vcmask 1040384
        %vm393 = vsmask.f32 256
        %vm394 = vmand %vm392, %vm393
        %v395 = vsel %vm394, 0, %v390
        %v396 = vrot.slane %v388, 1
        %v397 = vor.u32 %v385, %v396
        %vm399 = vcmask 1047552
        %vm400 = vsmask.f32 7424
        %vm401 = vmand %vm399, %vm400
        %v402 = vsel %vm401, %v397, 0
        %v403 = vld [vmem:[#allocation6] sm:$0x3]
        %s404 = scalar_lea.vmem [#allocation6], 2
        %v405 = vld [vmem:[%s404] sm:$0x3]
        %vm406 = vcmask 31744
        %v407 = vsel %vm406, %v383, 0
        %vm409 = vcmask 1041408
        %v411 = vsel %vm409, %v405, 0
        %413 = vmatprep.subr.bf16.mxu0 0
        %414 = vmatpush1.bf16.msra.mxu0 %v411
        %415 = vmatprep.subr.bf16.mxu0 0
        %416 = vmatpush1.bf16.msra.mxu0 0
        %417 = vmatprep.subr.bf16.mxu0 0
        %418 = vmatpush1.bf16.msra.mxu0 0
        %419 = vmatprep.subr.bf16.mxu0 0
        %420 = vmatpush1.bf16.msra.mxu0 0
        %421 = vmatprep.subr.bf16.mxu0 0
        %422 = vmatpush1.bf16.msra.mxu0 0
        %423 = vmatprep.subr.bf16.mxu0 0
        %424 = vmatpush1.bf16.msra.mxu0 0
        %425 = vmatprep.subr.bf16.mxu0 0
        %426 = vmatpush1.bf16.msra.mxu0 0
        %427 = vmatprep.subr.bf16.mxu0 0
        %428 = vmatpush1.bf16.msra.mxu0 0
        %429 = vmatprep.subr.bf16.mxu0 0
        %430 = vmatpush1.bf16.msra.mxu0 0
        %431 = vmatprep.subr.bf16.mxu0 0
        %432 = vmatpush1.bf16.msra.mxu0 0
        %433 = vmatprep.subr.bf16.mxu0 0
        %434 = vmatpush1.bf16.msra.mxu0 0
        %435 = vmatprep.subr.bf16.mxu0 0
        %436 = vmatpush1.bf16.msra.mxu0 0
        %437 = vmatprep.subr.bf16.mxu0 0
        %438 = vmatpush1.bf16.msra.mxu0 0
        %439 = vmatprep.subr.bf16.mxu0 0
        %440 = vmatpush1.bf16.msra.mxu0 0
        %441 = vmatprep.subr.bf16.mxu0 0
        %442 = vmatpush1.bf16.msra.mxu0 0
        %443 = vmatprep.subr.bf16.mxu0 0
        %444 = vmatpush1.bf16.msra.mxu0 0
        %445 = vmatprep.mubr.bf16.mxu0 0
        %446 = vmatmul.mubr.bf16.gmra.mrb[0].mxu0 %v407
        %v447 = vpop.f32.mrb[0].mxu0
        %v448 = vadd.f32 0.0, %v447
        %v449 = vpop.f32.mrb[0].mxu0
        %v450 = vpop.f32.mrb[0].mxu0
        %v451 = vadd.f32 0.0, %v450
        %v452 = vpop.f32.mrb[0].mxu0
        %453 = vdwg.mxu0
        %v455 = vsel %vm406, %v395, 0
        %v458 = vsel %vm409, %v403, 0
        %460 = vmatprep.subr.bf16.mxu0 0
        %461 = vmatpush1.bf16.msra.mxu0 %v458
        %462 = vmatprep.subr.bf16.mxu0 0
        %463 = vmatpush1.bf16.msra.mxu0 0
        %464 = vmatprep.subr.bf16.mxu0 0
        %465 = vmatpush1.bf16.msra.mxu0 0
        %466 = vmatprep.subr.bf16.mxu0 0
        %467 = vmatpush1.bf16.msra.mxu0 0
        %468 = vmatprep.subr.bf16.mxu0 0
        %469 = vmatpush1.bf16.msra.mxu0 0
        %470 = vmatprep.subr.bf16.mxu0 0
        %471 = vmatpush1.bf16.msra.mxu0 0
        %472 = vmatprep.subr.bf16.mxu0 0
        %473 = vmatpush1.bf16.msra.mxu0 0
        %474 = vmatprep.subr.bf16.mxu0 0
        %475 = vmatpush1.bf16.msra.mxu0 0
        %476 = vmatprep.subr.bf16.mxu0 0
        %477 = vmatpush1.bf16.msra.mxu0 0
        %478 = vmatprep.subr.bf16.mxu0 0
        %479 = vmatpush1.bf16.msra.mxu0 0
        %480 = vmatprep.subr.bf16.mxu0 0
        %481 = vmatpush1.bf16.msra.mxu0 0
        %482 = vmatprep.subr.bf16.mxu0 0
        %483 = vmatpush1.bf16.msra.mxu0 0
        %484 = vmatprep.subr.bf16.mxu0 0
        %485 = vmatpush1.bf16.msra.mxu0 0
        %486 = vmatprep.subr.bf16.mxu0 0
        %487 = vmatpush1.bf16.msra.mxu0 0
        %488 = vmatprep.subr.bf16.mxu0 0
        %489 = vmatpush1.bf16.msra.mxu0 0
        %490 = vmatprep.subr.bf16.mxu0 0
        %491 = vmatpush1.bf16.msra.mxu0 0
        %492 = vmatprep.mubr.bf16.mxu0 0
        %493 = vmatmul.mubr.bf16.gmra.mrb[0].mxu0 %v455
        %v494 = vpop.f32.mrb[0].mxu0
        %v495 = vadd.f32 %v448, %v494
        %v496 = vpop.f32.mrb[0].mxu0
        %v497 = vpop.f32.mrb[0].mxu0
        %v498 = vadd.f32 %v451, %v497
        %v499 = vpop.f32.mrb[0].mxu0
        %500 = vdwg.mxu0
        %s501 = scalar_lea.vmem [#allocation6], 4
        %v502 = vld [vmem:[%s501] sm:$0x3]
        %v504 = vsel %vm406, %v402, 0
        %v507 = vsel %vm409, %v502, 0
        %509 = vmatprep.subr.bf16.mxu0 0
        %510 = vmatpush1.bf16.msra.mxu0 %v507
        %511 = vmatprep.subr.bf16.mxu0 0
        %512 = vmatpush1.bf16.msra.mxu0 0
        %513 = vmatprep.subr.bf16.mxu0 0
        %514 = vmatpush1.bf16.msra.mxu0 0
        %515 = vmatprep.subr.bf16.mxu0 0
        %516 = vmatpush1.bf16.msra.mxu0 0
        %517 = vmatprep.subr.bf16.mxu0 0
        %518 = vmatpush1.bf16.msra.mxu0 0
        %519 = vmatprep.subr.bf16.mxu0 0
        %520 = vmatpush1.bf16.msra.mxu0 0
        %521 = vmatprep.subr.bf16.mxu0 0
        %522 = vmatpush1.bf16.msra.mxu0 0
        %523 = vmatprep.subr.bf16.mxu0 0
        %524 = vmatpush1.bf16.msra.mxu0 0
        %525 = vmatprep.subr.bf16.mxu0 0
        %526 = vmatpush1.bf16.msra.mxu0 0
        %527 = vmatprep.subr.bf16.mxu0 0
        %528 = vmatpush1.bf16.msra.mxu0 0
        %529 = vmatprep.subr.bf16.mxu0 0
        %530 = vmatpush1.bf16.msra.mxu0 0
        %531 = vmatprep.subr.bf16.mxu0 0
        %532 = vmatpush1.bf16.msra.mxu0 0
        %533 = vmatprep.subr.bf16.mxu0 0
        %534 = vmatpush1.bf16.msra.mxu0 0
        %535 = vmatprep.subr.bf16.mxu0 0
        %536 = vmatpush1.bf16.msra.mxu0 0
        %537 = vmatprep.subr.bf16.mxu0 0
        %538 = vmatpush1.bf16.msra.mxu0 0
        %539 = vmatprep.subr.bf16.mxu0 0
        %540 = vmatpush1.bf16.msra.mxu0 0
        %541 = vmatprep.mubr.bf16.mxu0 0
        %542 = vmatmul.mubr.bf16.gmra.mrb[0].mxu0 %v504
        %v543 = vpop.f32.mrb[0].mxu0
        %v544 = vadd.f32 0.0, %v543
        %v545 = vpop.f32.mrb[0].mxu0
        %v546 = vpop.f32.mrb[0].mxu0
        %v547 = vadd.f32 0.0, %v546
        %v548 = vpop.f32.mrb[0].mxu0
        %549 = vdwg.mxu0
        %v550 = vadd.f32 %v495, %v544
        %v551 = vadd.f32 %v498, %v547
        %v552 = vld [vmem:[#allocation9] sm:$0x1]
        %v554 = vlaneseq
        %v555 = vshrl.u32 %v554, 7
        %v556 = vsub.s32 0, %v555
        %v557 = vrot.slane %v552, %v556
        %v559 = vmul.f32 %v550, %v557
        %v560 = vmul.f32 %v551, %v557
        %v561 = vld [vmem:[#allocation11] sm:$0x1]
        %v563 = vlaneseq
        %v564 = vshrl.u32 %v563, 7
        %v565 = vsub.s32 0, %v564
        %v566 = vrot.slane %v561, %v565
        %v568 = vadd.f32 %v559, %v566
        %v569 = vadd.f32 %v560, %v566
        %v570 = vmax.f32 %v568, 0.0
        %v571 = vmax.f32 %v569, 0.0
        %v572 = vpack.c.bf16 %v571, %v570
        %v574 = vrot.slane %v572, 7
        %vm575 = vcmask 1040384
        %v578 = vsel %vm575, 0, %v574
        %v579 = vrot.slane %v572, 1
        %vm580 = vcmask 1046528
        %v582 = vsel %vm580, %v579, 0
        %v583 = vld [vmem:[#allocation8] sm:$0xf]
        %s584 = scalar_lea.vmem [#allocation8], 4
        %v585 = vld [vmem:[%s584] sm:$0xf]
        %vm586 = vcmask 64512
        %v588 = vsel %vm586, %v572, 0
        %vm590 = vcmask 1043456
        %v592 = vsel %vm590, %v585, 0
        %594 = vmatprep.subr.bf16.mxu0 0
        %595 = vmatpush1.bf16.msra.mxu0 %v592
        %596 = vmatprep.subr.bf16.mxu0 0
        %597 = vmatpush1.bf16.msra.mxu0 0
        %598 = vmatprep.subr.bf16.mxu0 0
        %599 = vmatpush1.bf16.msra.mxu0 0
        %600 = vmatprep.subr.bf16.mxu0 0
        %601 = vmatpush1.bf16.msra.mxu0 0
        %602 = vmatprep.subr.bf16.mxu0 0
        %603 = vmatpush1.bf16.msra.mxu0 0
        %604 = vmatprep.subr.bf16.mxu0 0
        %605 = vmatpush1.bf16.msra.mxu0 0
        %606 = vmatprep.subr.bf16.mxu0 0
        %607 = vmatpush1.bf16.msra.mxu0 0
        %608 = vmatprep.subr.bf16.mxu0 0
        %609 = vmatpush1.bf16.msra.mxu0 0
        %610 = vmatprep.subr.bf16.mxu0 0
        %611 = vmatpush1.bf16.msra.mxu0 0
        %612 = vmatprep.subr.bf16.mxu0 0
        %613 = vmatpush1.bf16.msra.mxu0 0
        %614 = vmatprep.subr.bf16.mxu0 0
        %615 = vmatpush1.bf16.msra.mxu0 0
        %616 = vmatprep.subr.bf16.mxu0 0
        %617 = vmatpush1.bf16.msra.mxu0 0
        %618 = vmatprep.subr.bf16.mxu0 0
        %619 = vmatpush1.bf16.msra.mxu0 0
        %620 = vmatprep.subr.bf16.mxu0 0
        %621 = vmatpush1.bf16.msra.mxu0 0
        %622 = vmatprep.subr.bf16.mxu0 0
        %623 = vmatpush1.bf16.msra.mxu0 0
        %624 = vmatprep.subr.bf16.mxu0 0
        %625 = vmatpush1.bf16.msra.mxu0 0
        %626 = vmatprep.mubr.bf16.mxu0 0
        %627 = vmatmul.mubr.bf16.gmra.mrb[0].mxu0 %v588
        %v628 = vpop.f32.mrb[0].mxu0
        %v629 = vadd.f32 0.0, %v628
        %v630 = vpop.f32.mrb[0].mxu0
        %v631 = vpop.f32.mrb[0].mxu0
        %v632 = vadd.f32 0.0, %v631
        %v633 = vpop.f32.mrb[0].mxu0
        %634 = vdwg.mxu0
        %v635 = vsel %vm586, %v578, 0
        %v638 = vsel %vm590, %v583, 0
        %640 = vmatprep.subr.bf16.mxu0 0
        %641 = vmatpush1.bf16.msra.mxu0 %v638
        %642 = vmatprep.subr.bf16.mxu0 0
        %643 = vmatpush1.bf16.msra.mxu0 0
        %644 = vmatprep.subr.bf16.mxu0 0
        %645 = vmatpush1.bf16.msra.mxu0 0
        %646 = vmatprep.subr.bf16.mxu0 0
        %647 = vmatpush1.bf16.msra.mxu0 0
        %648 = vmatprep.subr.bf16.mxu0 0
        %649 = vmatpush1.bf16.msra.mxu0 0
        %650 = vmatprep.subr.bf16.mxu0 0
        %651 = vmatpush1.bf16.msra.mxu0 0
        %652 = vmatprep.subr.bf16.mxu0 0
        %653 = vmatpush1.bf16.msra.mxu0 0
        %654 = vmatprep.subr.bf16.mxu0 0
        %655 = vmatpush1.bf16.msra.mxu0 0
        %656 = vmatprep.subr.bf16.mxu0 0
        %657 = vmatpush1.bf16.msra.mxu0 0
        %658 = vmatprep.subr.bf16.mxu0 0
        %659 = vmatpush1.bf16.msra.mxu0 0
        %660 = vmatprep.subr.bf16.mxu0 0
        %661 = vmatpush1.bf16.msra.mxu0 0
        %662 = vmatprep.subr.bf16.mxu0 0
        %663 = vmatpush1.bf16.msra.mxu0 0
        %664 = vmatprep.subr.bf16.mxu0 0
        %665 = vmatpush1.bf16.msra.mxu0 0
        %666 = vmatprep.subr.bf16.mxu0 0
        %667 = vmatpush1.bf16.msra.mxu0 0
        %668 = vmatprep.subr.bf16.mxu0 0
        %669 = vmatpush1.bf16.msra.mxu0 0
        %670 = vmatprep.subr.bf16.mxu0 0
        %671 = vmatpush1.bf16.msra.mxu0 0
        %672 = vmatprep.mubr.bf16.mxu0 0
        %673 = vmatmul.mubr.bf16.gmra.mrb[0].mxu0 %v635
        %v674 = vpop.f32.mrb[0].mxu0
        %v675 = vadd.f32 %v629, %v674
        %v676 = vpop.f32.mrb[0].mxu0
        %v677 = vpop.f32.mrb[0].mxu0
        %v678 = vadd.f32 %v632, %v677
        %v679 = vpop.f32.mrb[0].mxu0
        %680 = vdwg.mxu0
        %s681 = scalar_lea.vmem [#allocation8], 8
        %v682 = vld [vmem:[%s681] sm:$0xf]
        %v683 = vsel %vm586, %v582, 0
        %v686 = vsel %vm590, %v682, 0
        %688 = vmatprep.subr.bf16.mxu0 0
        %689 = vmatpush1.bf16.msra.mxu0 %v686
        %690 = vmatprep.subr.bf16.mxu0 0
        %691 = vmatpush1.bf16.msra.mxu0 0
        %692 = vmatprep.subr.bf16.mxu0 0
        %693 = vmatpush1.bf16.msra.mxu0 0
        %694 = vmatprep.subr.bf16.mxu0 0
        %695 = vmatpush1.bf16.msra.mxu0 0
        %696 = vmatprep.subr.bf16.mxu0 0
        %697 = vmatpush1.bf16.msra.mxu0 0
        %698 = vmatprep.subr.bf16.mxu0 0
        %699 = vmatpush1.bf16.msra.mxu0 0
        %700 = vmatprep.subr.bf16.mxu0 0
        %701 = vmatpush1.bf16.msra.mxu0 0
        %702 = vmatprep.subr.bf16.mxu0 0
        %703 = vmatpush1.bf16.msra.mxu0 0
        %704 = vmatprep.subr.bf16.mxu0 0
        %705 = vmatpush1.bf16.msra.mxu0 0
        %706 = vmatprep.subr.bf16.mxu0 0
        %707 = vmatpush1.bf16.msra.mxu0 0
        %708 = vmatprep.subr.bf16.mxu0 0
        %709 = vmatpush1.bf16.msra.mxu0 0
        %710 = vmatprep.subr.bf16.mxu0 0
        %711 = vmatpush1.bf16.msra.mxu0 0
        %712 = vmatprep.subr.bf16.mxu0 0
        %713 = vmatpush1.bf16.msra.mxu0 0
        %714 = vmatprep.subr.bf16.mxu0 0
        %715 = vmatpush1.bf16.msra.mxu0 0
        %716 = vmatprep.subr.bf16.mxu0 0
        %717 = vmatpush1.bf16.msra.mxu0 0
        %718 = vmatprep.subr.bf16.mxu0 0
        %719 = vmatpush1.bf16.msra.mxu0 0
        %720 = vmatprep.mubr.bf16.mxu0 0
        %721 = vmatmul.mubr.bf16.gmra.mrb[0].mxu0 %v683
        %v722 = vpop.f32.mrb[0].mxu0
        %v723 = vadd.f32 0.0, %v722
        %v724 = vpop.f32.mrb[0].mxu0
        %v725 = vpop.f32.mrb[0].mxu0
        %v726 = vadd.f32 0.0, %v725
        %v727 = vpop.f32.mrb[0].mxu0
        %728 = vdwg.mxu0
        %v729 = vadd.f32 %v675, %v723
        %v730 = vadd.f32 %v678, %v726
        %v731 = vld [vmem:[#allocation12] sm:$0x1]
        %v733 = vlaneseq
        %v734 = vshrl.u32 %v733, 7
        %v735 = vsub.s32 0, %v734
        %v736 = vrot.slane %v731, %v735
        %v738 = vmul.f32 %v729, %v736
        %v739 = vmul.f32 %v730, %v736
        %v740 = vld [vmem:[#allocation14] sm:$0x1]
        %v742 = vlaneseq
        %v743 = vshrl.u32 %v742, 7
        %v744 = vsub.s32 0, %v743
        %v745 = vrot.slane %v740, %v744
        %v747 = vadd.f32 %v738, %v745
        %v748 = vadd.f32 %v739, %v745
        %v749 = vmax.f32 %v747, 0.0
        %v750 = vmax.f32 %v748, 0.0
        %751 = vst.msk [vmem:[#allocation2] sm:$0xff] %vm586, %v749
        %752 = vst.msk [vmem:[#allocation2 + $0x8] sm:$0xff] %vm586, %v750
        %v753 = vld [vmem:[#allocation2] ss:$2 sm:$0xff]
        %s754 = scalar_lea.vmem [#allocation2], 1
        %v755 = vld [vmem:[%s754] ss:$2 sm:$0xff]
        %v756 = vmax.f32 %v753, %v755
        %757 = vst.msk [vmem:[%s375] sm:$0xff] %vm586, %v756
        %s758 = sand.u32 %s187, 1
        %s759 = scalar_lea.sflag [#allocation5], %s758
        %s760 = sand.u32 %s187, 1
        %s761 = smul.addr %s760, 8
        %s762 = scalar_lea.vmem [#allocation15], %s761
        // Predicated region
        $region77: #{tpu_custom_call.1} parent=47 // pred_check
          %p763 = pneg %p197
        $region78: #{tpu_custom_call.1} parent=47 // pred_check_branch
          %765 = sbr.rel (%p763) target = $region80
        $region79: #{tpu_custom_call.1} parent=47 // pred_region
          %s767 = ssub.s32 128, 128
          %768 = vsyncadd %s759, %s767
          %s769 = smul.addr %s27, 128
          %s770 = scalar_lea.hbm %s7, %s769
          %s772 = sshll.u32 %s762, 4
          %s773 = int_to_ptr.vmem [resolvable:$true] %s772
          %775 = dma.vmem_to_hbm [thread:$0]  %s773, 128, %s770, %s759
        $region80: #{tpu_custom_call.1} parent=47 // pred_fallthru
          _
      $region48: #{tpu_custom_call.1} parent=5 // pred_fallthru
        _
      %p776 = scmp.le.s32.totalorder 2, %s22
      // Predicated region
      $region81: #{tpu_custom_call.1} parent=5 // pred_check
        %p777 = pneg %p776
      $region82: #{tpu_custom_call.1} parent=5 // pred_check_branch
        %779 = sbr.rel (%p777) target = $region84
      $region83: #{tpu_custom_call.1} parent=5 // pred_region
        %s780 = ssub.s32 %s22, 2
        // Predicated region
        $region85: #{tpu_custom_call.1} parent=83 // pred_check
          %p781 = pneg %p203
        $region86: #{tpu_custom_call.1} parent=83 // pred_check_branch
          %783 = sbr.rel (%p781) target = $region88
        $region87: #{tpu_custom_call.1} parent=83 // pred_region
          %s784 = sand.u32 %s188, 1
          %s785 = scalar_lea.sflag [#allocation5], %s784
          %s786 = sand.u32 %s188, 1
          %s787 = smul.addr %s786, 8
          %s788 = scalar_lea.vmem [#allocation15], %s787
          %789 = dma.done %s785, 128
        $region88: #{tpu_custom_call.1} parent=83 // pred_fallthru
          _
      $region84: #{tpu_custom_call.1} parent=5 // pred_fallthru
        _
    $region6: #{tpu_custom_call.1} parent=1 // loop_footer
      %s26 = sadd.s32 1, %s22
    $region7: #{tpu_custom_call.1} parent=1 // loop_footer_branch
      %21 = sbr.rel target = $region3
    $region8: #{tpu_custom_call.1} parent=1 // loop_exit
      _
    %790 = vsyncpa [#allocation4], 1
    %s791 = scalar_lea.sflag [#allocation4], 1
    %792 = vsyncpa %s791, 1
    %793 = vsyncpa [#allocation7], 1
    %794 = vsyncpa [#allocation10], 1
    %795 = vsyncpa [#allocation13], 1
    %796 = vsyncpa [#allocation5], 1
    %s797 = scalar_lea.sflag [#allocation5], 1
    %798 = vsyncpa %s797, 1

</llo_original>
